<compile_context>
chip_gen: v7x
topology: tpu7x:2x2x1
jax: 0.10.0
libtpu: 0.0.40
codegen_flags: <defaults>
</compile_context>

<pallas_src>
import functools

import jax
import jax.numpy as jnp
from jax import lax
from jax.experimental import pallas as pl
from jax.experimental.pallas import tpu as pltpu


# ----------------------------------------------------------------------------
# Pallas kernel: fused im2col-matmul + bias (+ReLU), one big K = 9*Cin matmul
# ----------------------------------------------------------------------------
def _conv_im2col_kernel(x_ref, w_ref, b_ref, o_ref, *, relu):
    # x_ref : (tm, K)      bf16   -- im2col rows for this M tile
    # w_ref : (K, Coutp)   bf16   -- full reshaped weight (constant over grid)
    # b_ref : (1, Coutp)   f32
    # o_ref : (tm, Coutp)  f32
    acc = jnp.dot(x_ref[...], w_ref[...], preferred_element_type=jnp.float32)
    acc = acc + b_ref[...]
    if relu:
        acc = jnp.maximum(acc, 0.0)
    o_ref[...] = acc.astype(o_ref.dtype)


def conv3x3(x, w, b, relu=True):
    """3x3 same convolution + bias (+ReLU) in NHWC via a Pallas matmul kernel.

    x: (B, H, W, Cin) f32, w: (3, 3, Cin, Cout) HWIO f32, b: (Cout,) f32
    Returns (B, H, W, Cout) f32.
    """
    B, H, W, Cin = x.shape
    Cout = w.shape[-1]
    K = 9 * Cin
    M = B * H * W

    # im2col glue in bf16: 9 shifted views of the zero-padded input, stacked
    # along the channel axis (order dy-major, dx-minor, cin-minor -> matches
    # w.reshape(9*Cin, Cout)).
    xp = jnp.pad(x.astype(jnp.bfloat16), ((0, 0), (1, 1), (1, 1), (0, 0)))
    taps = [xp[:, dy:dy + H, dx:dx + W, :] for dy in range(3) for dx in range(3)]
    xs = jnp.concatenate(taps, axis=-1).reshape(M, K)

    wk = w.astype(jnp.bfloat16).reshape(K, Cout)
    bk = b.astype(jnp.float32).reshape(1, Cout)

    # Lane-dense output for narrow-Cout layers: pad Cout up to 128.
    Coutp = Cout if Cout >= 128 else 128
    if Coutp != Cout:
        wk = jnp.pad(wk, ((0, 0), (0, Coutp - Cout)))
        bk = jnp.pad(bk, ((0, 0), (0, Coutp - Cout)))

    # M tiling (batch folded into M).  M is padded to a tile multiple.
    tm = 512 if (M >= 2048 and M % 512 == 0) else 256
    Mpad = -(-M // tm) * tm
    if Mpad != M:
        xs = jnp.pad(xs, ((0, Mpad - M), (0, 0)))

    # VMEM budget: double-buffered x/w/out tiles + bias + headroom (keep well
    # under v7x's 64 MiB physical VMEM).
    need = (2 * tm * K * 2) + (2 * K * Coutp * 2) + (2 * tm * Coutp * 4) + (2 * Coutp * 4)
    vmem_limit = int(min(max(need + (4 << 20), 16 << 20), 56 << 20))

    out = pl.pallas_call(
        functools.partial(_conv_im2col_kernel, relu=relu),
        out_shape=jax.ShapeDtypeStruct((Mpad, Coutp), jnp.float32),
        grid_spec=pltpu.PrefetchScalarGridSpec(
            num_scalar_prefetch=0,
            grid=(Mpad // tm,),
            in_specs=[
                pl.BlockSpec((tm, K), lambda i: (i, 0)),
                pl.BlockSpec((K, Coutp), lambda i: (0, 0)),   # constant -> fetched once
                pl.BlockSpec((1, Coutp), lambda i: (0, 0)),
            ],
            out_specs=pl.BlockSpec((tm, Coutp), lambda i: (i, 0)),
        ),
        compiler_params=pltpu.CompilerParams(
            dimension_semantics=("parallel",),
            vmem_limit_bytes=vmem_limit,
        ),
    )(xs, wk, bk)

    return out[:M, :Cout].reshape(B, H, W, Cout)


# Pure-JAX reference conv with the same dtype flow (bf16 operands, f32 accum),
# used only for a lightweight correctness check.
def conv3x3_ref(x, w, b, relu=True):
    y = lax.conv_general_dilated(
        x.astype(jnp.bfloat16), w.astype(jnp.bfloat16),
        window_strides=(1, 1), padding="SAME",
        dimension_numbers=("NHWC", "HWIO", "NHWC"),
        preferred_element_type=jnp.float32,
    )
    y = y + b[None, None, None, :].astype(jnp.float32)
    if relu:
        y = jnp.maximum(y, 0.0)
    return y


# ----------------------------------------------------------------------------
# Haar DWT / IWT (common.DWT / common.IWT) -- pure rearrangement glue in JAX
# ----------------------------------------------------------------------------
def dwt(x):
    # channels ordered (LL, HL, LH, HH), matching common.dwt_init.
    B, H, W, C = x.shape
    xr = x.reshape(B, H // 2, 2, W // 2, 2, C) / 2.0
    x1 = xr[:, :, 0, :, 0, :]  # even row, even col
    x2 = xr[:, :, 1, :, 0, :]  # odd row,  even col
    x3 = xr[:, :, 0, :, 1, :]  # even row, odd col
    x4 = xr[:, :, 1, :, 1, :]  # odd row,  odd col
    ll = x1 + x2 + x3 + x4
    hl = -x1 - x2 + x3 + x4
    lh = -x1 + x2 - x3 + x4
    hh = x1 - x2 - x3 + x4
    return jnp.concatenate([ll, hl, lh, hh], axis=-1)


def iwt(x):
    # inverse of dwt (matches common.iwt_init).
    B, H, W, C4 = x.shape
    C = C4 // 4
    x1 = x[..., 0 * C:1 * C] / 2.0
    x2 = x[..., 1 * C:2 * C] / 2.0
    x3 = x[..., 2 * C:3 * C] / 2.0
    x4 = x[..., 3 * C:4 * C] / 2.0
    a = x1 - x2 - x3 + x4  # (even row, even col)
    b = x1 - x2 + x3 - x4  # (odd row,  even col)
    c = x1 + x2 - x3 - x4  # (even row, odd col)
    d = x1 + x2 + x3 + x4  # (odd row,  odd col)
    row_even = jnp.stack([a, c], axis=3)            # (B, H, W, 2, C)
    row_odd = jnp.stack([b, d], axis=3)             # (B, H, W, 2, C)
    h = jnp.stack([row_even, row_odd], axis=2)      # (B, H, 2, W, 2, C)
    return h.reshape(B, 2 * H, 2 * W, C)


# ----------------------------------------------------------------------------
# Parameters (deterministic synthetic init) and BSR forward
# ----------------------------------------------------------------------------
def init_params(key, n_colors=1, n_feats=16):
    nf4, nf16 = n_feats * 4, n_feats * 16
    # (Cin, Cout, relu) per conv layer, mirroring BSR.__init__ (n = 3).
    spec = {
        "u2": [(n_colors, 256, True)] + [(256, 256, True)] * 3 + [(256, 640, True)],
        "u1": [(160, 160, True)] * 4,
        "u0": [(160, n_colors * 4, True)],
        "head": [(4 * n_colors, 160, True)],
        "d_l1": [(160, 160, True)] * 4,
        "d_l2": [(640, nf4, True)] + [(nf4, nf4, True)] * 3,
        "pro_l3": [(nf16, nf4, True), (nf4, nf16, True)],
        "i_l2": [(nf4, nf4, True)] * 3 + [(nf4, 640, True)],
        "i_l1": [(160, 160, True)] * 3,
        "tail": [(160, 4, False)],  # plain conv, no activation
    }
    params = {}
    for name, layers in spec.items():
        plist = []
        for (cin, cout, relu) in layers:
            key, kw, kb = jax.random.split(key, 3)
            fan_in = cin * 9
            w = jax.random.normal(kw, (3, 3, cin, cout), jnp.float32) * (2.0 / fan_in) ** 0.5
            bb = jax.random.uniform(kb, (cout,), jnp.float32, -0.01, 0.01)
            plist.append((w, bb, relu))
        params[name] = plist
    return params


def run_seq(x, layers, conv_fn):
    for (w, b, relu) in layers:
        x = conv_fn(x, w, b, relu)
    return x


def bsr_forward(x, params, conv_fn=conv3x3):
    u2 = run_seq(x, params["u2"], conv_fn)
    u1 = run_seq(iwt(u2), params["u1"], conv_fn)
    x0 = iwt(run_seq(u1, params["u0"], conv_fn))                       # "x" in torch code
    x1 = run_seq(run_seq(dwt(x0), params["head"], conv_fn) + u1,
                 params["d_l1"], conv_fn)
    x2 = run_seq(dwt(x1) + u2, params["d_l2"], conv_fn)
    x_ = iwt(run_seq(dwt(x2), params["pro_l3"], conv_fn)) + x2
    x_ = iwt(run_seq(x_, params["i_l2"], conv_fn)) + x1
    x_ = iwt(run_seq(run_seq(x_, params["i_l1"], conv_fn),
                     params["tail"], conv_fn)) + x0
    return x0, x_


if __name__ == "__main__":
    key = jax.random.PRNGKey(0)
    kx, kp = jax.random.split(key)

    # Matches the module: n_colors = 1 (required for the final residual add),
    # n_feats = 16, small spatial size.
    B, n_colors, H, W = 2, 1, 16, 16
    x_nchw = jax.random.normal(kx, (B, n_colors, H, W), jnp.float32)
    x = jnp.transpose(x_nchw, (0, 2, 3, 1))  # NCHW -> NHWC

    params = init_params(kp, n_colors=n_colors, n_feats=16)

    out_x, out_xr = bsr_forward(x, params, conv_fn=conv3x3)
    jax.block_until_ready((out_x, out_xr))

    # Lightweight correctness check against a pure-JAX (XLA conv) reference
    # with the same bf16-operand / f32-accumulate dtype flow.
    ref_x, ref_xr = bsr_forward(x, params, conv_fn=conv3x3_ref)
    denom = float(jnp.max(jnp.abs(ref_xr))) + 1e-6
    rel_err = float(jnp.max(jnp.abs(out_xr - ref_xr))) / denom
    assert rel_err < 2e-2, f"mismatch vs reference, rel err = {rel_err}"

    assert out_x.shape == (B, 4 * H, 4 * W, n_colors)
    assert out_xr.shape == (B, 4 * H, 4 * W, n_colors)
    print("KERNEL_OK")
</pallas_src>

<mosaic_0001>
module attributes {stable_mosaic.version = 11 : i64} {
  func.func @_conv_im2col_kernel(%arg0: i32, %arg1: memref<256x9xbf16, #tpu.memory_space<vmem>>, %arg2: memref<9x256xbf16, #tpu.memory_space<vmem>>, %arg3: memref<1x256xf32, #tpu.memory_space<vmem>>, %arg4: memref<256x256xf32, #tpu.memory_space<vmem>>) attributes {dimension_semantics = [#tpu.dimension_semantics<parallel>], iteration_bounds = array<i64: 2>, scalar_prefetch = 0 : i64, scratch_operands = 0 : i64, tpu.core_type = #tpu.core_type<tc>, window_params = [{transform_indices = @transform_0, window_bounds = array<i64: 256, 9>}, {pipeline_mode = #tpu.pipeline_mode<synchronous>, transform_indices = @transform_1, window_bounds = array<i64: 9, 256>}, {pipeline_mode = #tpu.pipeline_mode<synchronous>, transform_indices = @transform_2, window_bounds = array<i64: 1, 256>}, {transform_indices = @transform_3, window_bounds = array<i64: 256, 256>}]} {
    %c0 = arith.constant 0 : index
    %c0_0 = arith.constant 0 : index
    %0 = vector.load %arg1[%c0, %c0_0] : memref<256x9xbf16, #tpu.memory_space<vmem>>, vector<256x9xbf16>
    %c0_1 = arith.constant 0 : index
    %c0_2 = arith.constant 0 : index
    %1 = vector.load %arg2[%c0_1, %c0_2] : memref<9x256xbf16, #tpu.memory_space<vmem>>, vector<9x256xbf16>
    %cst = arith.constant dense<0.000000e+00> : vector<256x256xf32>
    %2 = tpu.matmul %0, %1, %cst {dimension_numbers = #tpu.dot_dimension_numbers<[1], [0], [0], [1], [0, 0, 1, 1], [], []>} : vector<256x9xbf16>, vector<9x256xbf16>, vector<256x256xf32> -> vector<256x256xf32>
    %c0_3 = arith.constant 0 : index
    %c0_4 = arith.constant 0 : index
    %3 = vector.load %arg3[%c0_3, %c0_4] : memref<1x256xf32, #tpu.memory_space<vmem>>, vector<1x256xf32>
    %4 = vector.broadcast %3 : vector<1x256xf32> to vector<256x256xf32>
    %5 = arith.addf %2, %4 : vector<256x256xf32>
    %cst_5 = arith.constant 0.000000e+00 : f32
    %6 = vector.broadcast %cst_5 : f32 to vector<256x256xf32>
    %7 = arith.maximumf %5, %6 : vector<256x256xf32>
    %c0_6 = arith.constant 0 : index
    %c0_7 = arith.constant 0 : index
    %8 = vector.load %arg4[%c0_6, %c0_7] : memref<256x256xf32, #tpu.memory_space<vmem>>, vector<256x256xf32>
    tpu.vector_store %arg4[%c0_6, %c0_7], %7 {strides = array<i32>} : memref<256x256xf32, #tpu.memory_space<vmem>>, vector<256x256xf32>,
    return
  }
  func.func @transform_0(%arg0: i32) -> (i32, i32) {
    %c0_i32 = arith.constant 0 : i32
    %c0_i32_0 = arith.constant 0 : i32
    return %arg0, %c0_i32 : i32, i32
  }
  func.func @transform_1(%arg0: i32) -> (i32, i32) {
    %c0_i32 = arith.constant 0 : i32
    %c0_i32_0 = arith.constant 0 : i32
    %c0_i32_1 = arith.constant 0 : i32
    return %c0_i32, %c0_i32_0 : i32, i32
  }
  func.func @transform_2(%arg0: i32) -> (i32, i32) {
    %c0_i32 = arith.constant 0 : i32
    %c0_i32_0 = arith.constant 0 : i32
    %c0_i32_1 = arith.constant 0 : i32
    return %c0_i32, %c0_i32_0 : i32, i32
  }
  func.func @transform_3(%arg0: i32) -> (i32, i32) {
    %c0_i32 = arith.constant 0 : i32
    %c0_i32_0 = arith.constant 0 : i32
    return %arg0, %c0_i32 : i32, i32
  }
}

</mosaic_0001>

<llo_original>
// kernel: tpu_custom_call.1
$region0: #{tpu_custom_call.1}
  #allocation0 [shape = 'u32[]', space=smem, size = 0x4, offset = 0x4, fixed_abs, tag = 'smem constant byte address 0x4 - core index']
  #allocation1 [shape = 'u32[144,128]{1,0:T(1,128)}', space=vmem, size = 0x12000, scoped, tag = 'internal scratch']
  %s0 = inlined_call_operand.vmem [shape: bf16[512,9], index: 0, kind: input, shape index: {}]
  %s1 = inlined_call_operand.vmem [shape: bf16[9,256], index: 1, kind: input, shape index: {}]
  %s2 = inlined_call_operand.vmem [shape: f32[1,256], index: 2, kind: input, shape index: {}]
  %s3 = inlined_call_operand.hbm [shape: f32[512,256], index: 3, kind: output, shape index: {}]
  %s4 = sld [smem:[#allocation0]]
  $region45: #{tpu_custom_call.1} parent=0
    _
  %s6 = ssub.s32 1, %s4
  %s7 = scalar_select 0, %s6, %s4
  $region1: #{tpu_custom_call.1} parent=0
    #allocation2 [shape = 'u8[524288]{0}', space=vmem, size = 0x80000, scoped, tag = 'output window, operand 0']
    #allocation3 [shape = 's32[2]{0}', space=sflag, size = 0x8, scoped, tag = 'scoped memory for tpu_custom_call.1']
    %8 = vsyncpa [#allocation3], 0
    %s9 = scalar_lea.sflag [#allocation3], 1
    %10 = vsyncpa %s9, 0
    loop: start=0, step=1, limit=4
    $region2: #{tpu_custom_call.1} parent=1 // loop_pre_header
      _
    $region3: #{tpu_custom_call.1} parent=1 // loop_header
      %s12 = sphi 0, %s16
      %p13 = scmp.ge.s32.totalorder %s12, 4
      %s22 = sphi 0, %s24
      %s25 = sphi 0, %s22
      %s26 = sphi 0, %s25
      %s42 = sphi 0, %s26
      %s46 = sphi 0, %s46
      %s48 = sphi 0, %s46
      %s49 = sphi 0, %s48
      %s63 = sphi 0, %s49
      %s67 = sphi 0, %s67
      %s69 = sphi 0, %s67
      %s70 = sphi 0, %s69
      %s84 = sphi 0, %s70
      %s90 = sphi 0, %s92
      %s93 = sphi 0, %s90
      %s94 = sphi 0, %s93
      %s110 = sphi 0, %s94
    $region4: #{tpu_custom_call.1} parent=1 // loop_header_branch
      %15 = sbr.rel (%p13) target = $region8
    $region5: #{tpu_custom_call.1} parent=1 // loop_body
      %s17 = ssub.s32 %s12, 1
      %s18 = ssub.s32 %s12, 2
      %s19 = sadd.s32 %s12, 1
      %s20 = ssub.s32 %s12, %s19
      %p21 = scmp.eq.s32.totalorder %s20, 0
      %s23 = sadd.s32 %s22, 1
      %s24 = scalar_select %p21, %s22, %s23
      %p27 = pneg %p21
      %p28 = scmp.eq.s32.totalorder %s12, 1
      %p29 = por %p27, %p28
      %p30 = scmp.ne.s32.totalorder %s22, %s25
      %p31 = scmp.eq.s32.totalorder %s12, 0
      %p32 = por %p30, %p31
      %p33 = scmp.ne.s32.totalorder %s22, %s25
      %p34 = scmp.eq.s32.totalorder %s17, 1
      %p35 = por %p33, %p34
      %p36 = scmp.ne.s32.totalorder %s25, %s26
      %p37 = scmp.eq.s32.totalorder %s17, 0
      %p38 = por %p36, %p37
      %p39 = scmp.ne.s32.totalorder %s25, %s26
      %p40 = scmp.eq.s32.totalorder %s18, 1
      %p41 = por %p39, %p40
      %p43 = scmp.ne.s32.totalorder %s26, %s42
      %p44 = scmp.eq.s32.totalorder %s18, 0
      %p45 = por %p43, %p44
      %s47 = sadd.s32 %s46, 1
      %p50 = scmp.eq.s32.totalorder %s12, 1
      %p51 = scmp.ne.s32.totalorder %s46, %s48
      %p52 = scmp.eq.s32.totalorder %s12, 0
      %p53 = por %p51, %p52
      %p54 = scmp.ne.s32.totalorder %s46, %s48
      %p55 = scmp.eq.s32.totalorder %s17, 1
      %p56 = por %p54, %p55
      %p57 = scmp.ne.s32.totalorder %s48, %s49
      %p58 = scmp.eq.s32.totalorder %s17, 0
      %p59 = por %p57, %p58
      %p60 = scmp.ne.s32.totalorder %s48, %s49
      %p61 = scmp.eq.s32.totalorder %s18, 1
      %p62 = por %p60, %p61
      %p64 = scmp.ne.s32.totalorder %s49, %s63
      %p65 = scmp.eq.s32.totalorder %s18, 0
      %p66 = por %p64, %p65
      %s68 = sadd.s32 %s67, 1
      %p71 = scmp.eq.s32.totalorder %s12, 1
      %p72 = scmp.ne.s32.totalorder %s67, %s69
      %p73 = scmp.eq.s32.totalorder %s12, 0
      %p74 = por %p72, %p73
      %p75 = scmp.ne.s32.totalorder %s67, %s69
      %p76 = scmp.eq.s32.totalorder %s17, 1
      %p77 = por %p75, %p76
      %p78 = scmp.ne.s32.totalorder %s69, %s70
      %p79 = scmp.eq.s32.totalorder %s17, 0
      %p80 = por %p78, %p79
      %p81 = scmp.ne.s32.totalorder %s69, %s70
      %p82 = scmp.eq.s32.totalorder %s18, 1
      %p83 = por %p81, %p82
      %p85 = scmp.ne.s32.totalorder %s70, %s84
      %p86 = scmp.eq.s32.totalorder %s18, 0
      %p87 = por %p85, %p86
      %s88 = ssub.s32 %s12, %s19
      %p89 = scmp.eq.s32.totalorder %s88, 0
      %s91 = sadd.s32 %s90, 1
      %s92 = scalar_select %p89, %s90, %s91
      %p95 = pneg %p89
      %p96 = scmp.eq.s32.totalorder %s12, 1
      %p97 = por %p95, %p96
      %p98 = scmp.ne.s32.totalorder %s90, %s93
      %p99 = scmp.eq.s32.totalorder %s12, 0
      %p100 = por %p98, %p99
      %p101 = scmp.ne.s32.totalorder %s90, %s93
      %p102 = scmp.eq.s32.totalorder %s17, 1
      %p103 = por %p101, %p102
      %p104 = scmp.ne.s32.totalorder %s93, %s94
      %p105 = scmp.eq.s32.totalorder %s17, 0
      %p106 = por %p104, %p105
      %p107 = scmp.ne.s32.totalorder %s93, %s94
      %p108 = scmp.eq.s32.totalorder %s18, 1
      %p109 = por %p107, %p108
      %p111 = scmp.ne.s32.totalorder %s94, %s110
      %p112 = scmp.eq.s32.totalorder %s18, 0
      %p113 = por %p111, %p112
      %p114 = scmp.le.s32.totalorder 1, %s12
      %p115 = scmp.lt.s32.totalorder %s12, 3
      %p116 = pnand %p114, %p115
      %p117 = pneg %p116
      // Predicated region
      $region9: #{tpu_custom_call.1} parent=5 // pred_check
        _
      $region10: #{tpu_custom_call.1} parent=5 // pred_check_branch
        %119 = sbr.rel (%p116) target = $region12
      $region11: #{tpu_custom_call.1} parent=5 // pred_region
        %s120 = ssub.s32 %s12, 1
        // Predicated region
        $region13: #{tpu_custom_call.1} parent=11 // pred_check
          %p121 = pneg %p59
        $region14: #{tpu_custom_call.1} parent=11 // pred_check_branch
          %123 = sbr.rel (%p121) target = $region16
        $region15: #{tpu_custom_call.1} parent=11 // pred_region
          _
        $region16: #{tpu_custom_call.1} parent=11 // pred_fallthru
          _
        // Predicated region
        $region17: #{tpu_custom_call.1} parent=11 // pred_check
          %p124 = pneg %p80
        $region18: #{tpu_custom_call.1} parent=11 // pred_check_branch
          %126 = sbr.rel (%p124) target = $region20
        $region19: #{tpu_custom_call.1} parent=11 // pred_region
          _
        $region20: #{tpu_custom_call.1} parent=11 // pred_fallthru
          _
      $region12: #{tpu_custom_call.1} parent=5 // pred_fallthru
        _
      %p127 = scmp.lt.s32.totalorder %s12, 2
      // Predicated region
      $region21: #{tpu_custom_call.1} parent=5 // pred_check
        %p128 = pneg %p127
      $region22: #{tpu_custom_call.1} parent=5 // pred_check_branch
        %130 = sbr.rel (%p128) target = $region24
      $region23: #{tpu_custom_call.1} parent=5 // pred_region
        // Predicated region
        $region25: #{tpu_custom_call.1} parent=23 // pred_check
          %p131 = pneg %p32
        $region26: #{tpu_custom_call.1} parent=23 // pred_check_branch
          %133 = sbr.rel (%p131) target = $region28
        $region27: #{tpu_custom_call.1} parent=23 // pred_region
          %s134 = smul.u32 32, %s12
          %p135 = scmp.lt.s32.totalorder %s134, 63
          %s136 = scalar_select %p135, %s134, 63
          %s137 = smul.addr %s136, 4
          %s138 = scalar_lea.vmem %s0, %s137
          %s139 = smul.u32 32, %s12
        $region28: #{tpu_custom_call.1} parent=23 // pred_fallthru
          _
      $region24: #{tpu_custom_call.1} parent=5 // pred_fallthru
        _
      %p140 = scmp.le.s32.totalorder 1, %s12
      %p141 = scmp.lt.s32.totalorder %s12, 3
      %p142 = pnand %p140, %p141
      %p143 = pneg %p142
      // Predicated region
      $region29: #{tpu_custom_call.1} parent=5 // pred_check
        _
      $region30: #{tpu_custom_call.1} parent=5 // pred_check_branch
        %145 = sbr.rel (%p142) target = $region32
      $region31: #{tpu_custom_call.1} parent=5 // pred_region
        %s146 = ssub.s32 %s12, 1
        %s147 = smul.u32 32, %s17
        %p148 = scmp.lt.s32.totalorder %s147, 63
        %s149 = scalar_select %p148, %s147, 63
        %s150 = smul.addr %s149, 4
        %s151 = scalar_lea.vmem %s0, %s150
        %p152 = pneg %p38
        %p153 = pneg %p35
        %p154 = pneg %p59
        %p155 = pneg %p56
        %p156 = pneg %p80
        %p157 = pneg %p77
        %p158 = pneg %p106
        %p159 = pneg %p103
        %s160 = sand.u32 %s93, 1
        %s161 = scalar_lea.sflag [#allocation3], %s160
        %s162 = sand.u32 %s93, 1
        %s163 = smul.addr %s162, 512
        %s164 = scalar_lea.vmem [#allocation2], %s163
        %s165 = smul.u32 32, %s17
        %p166 = scmp.lt.s32.totalorder %s165, 63
        %s167 = scalar_select %p166, %s165, 63
        %s168 = smul.addr %s167, 4
        %s169 = scalar_lea.vmem %s0, %s168
        %s170 = smul.u32 32, %s17
        %s171 = smul.u32 32, %s17
        %v173 = vld [vmem:[%s169] sm:$0xf]
        %v174 = vld [vmem:[%s169 + $0x4] sm:$0xf]
        %v175 = vld [vmem:[%s169 + $0x8] sm:$0xf]
        %v176 = vld [vmem:[%s169 + $0xc] sm:$0xf]
        %v177 = vld [vmem:[%s169 + $0x10] sm:$0xf]
        %v178 = vld [vmem:[%s169 + $0x14] sm:$0xf]
        %v179 = vld [vmem:[%s169 + $0x18] sm:$0xf]
        %v180 = vld [vmem:[%s169 + $0x1c] sm:$0xf]
        %v181 = vld [vmem:[%s169 + $0x20] sm:$0xf]
        %v182 = vld [vmem:[%s169 + $0x24] sm:$0xf]
        %v183 = vld [vmem:[%s169 + $0x28] sm:$0xf]
        %v184 = vld [vmem:[%s169 + $0x2c] sm:$0xf]
        %v185 = vld [vmem:[%s169 + $0x30] sm:$0xf]
        %v186 = vld [vmem:[%s169 + $0x34] sm:$0xf]
        %v187 = vld [vmem:[%s169 + $0x38] sm:$0xf]
        %v188 = vld [vmem:[%s169 + $0x3c] sm:$0xf]
        %v189 = vld [vmem:[%s169 + $0x40] sm:$0xf]
        %v190 = vld [vmem:[%s169 + $0x44] sm:$0xf]
        %v191 = vld [vmem:[%s169 + $0x48] sm:$0xf]
        %v192 = vld [vmem:[%s169 + $0x4c] sm:$0xf]
        %v193 = vld [vmem:[%s169 + $0x50] sm:$0xf]
        %v194 = vld [vmem:[%s169 + $0x54] sm:$0xf]
        %v195 = vld [vmem:[%s169 + $0x58] sm:$0xf]
        %v196 = vld [vmem:[%s169 + $0x5c] sm:$0xf]
        %v197 = vld [vmem:[%s169 + $0x60] sm:$0xf]
        %v198 = vld [vmem:[%s169 + $0x64] sm:$0xf]
        %v199 = vld [vmem:[%s169 + $0x68] sm:$0xf]
        %v200 = vld [vmem:[%s169 + $0x6c] sm:$0xf]
        %v201 = vld [vmem:[%s169 + $0x70] sm:$0xf]
        %v202 = vld [vmem:[%s169 + $0x74] sm:$0xf]
        %v203 = vld [vmem:[%s169 + $0x78] sm:$0xf]
        %v204 = vld [vmem:[%s169 + $0x7c] sm:$0xf]
        %v205 = vld [vmem:[%s1] sm:$0xff]
        %v206 = vld [vmem:[%s1 + $0x8] sm:$0x11]
        %v207 = vld [vmem:[%s2] sm:$0x3]
        %v209 = vlaneseq
        %v210 = vshrl.u32 %v209, 7
        %v211 = vsub.s32 0, %v210
        %v212 = vrot.slane %v207, %v211
        %v213 = vlaneseq
        %v214 = vshrl.u32 %v213, 7
        %v215 = vsub.s32 1, %v214
        %v216 = vrot.slane %v207, %v215
        %v251 = vunpack.c.l.b16 %v173
        %v252 = vunpack.c.l.b16 %v174
        %v253 = vunpack.c.l.b16 %v175
        %v254 = vunpack.c.l.b16 %v176
        %v255 = vunpack.c.l.b16 %v177
        %v256 = vunpack.c.l.b16 %v178
        %v257 = vunpack.c.l.b16 %v179
        %v258 = vunpack.c.l.b16 %v180
        %v259 = vunpack.c.l.b16 %v181
        %v260 = vunpack.c.l.b16 %v182
        %v261 = vunpack.c.l.b16 %v183
        %v262 = vunpack.c.l.b16 %v184
        %v263 = vunpack.c.l.b16 %v185
        %v264 = vunpack.c.l.b16 %v186
        %v265 = vunpack.c.l.b16 %v187
        %v266 = vunpack.c.l.b16 %v188
        %v267 = vunpack.c.l.b16 %v189
        %v268 = vunpack.c.l.b16 %v190
        %v269 = vunpack.c.l.b16 %v191
        %v270 = vunpack.c.l.b16 %v192
        %v271 = vunpack.c.l.b16 %v193
        %v272 = vunpack.c.l.b16 %v194
        %v273 = vunpack.c.l.b16 %v195
        %v274 = vunpack.c.l.b16 %v196
        %v275 = vunpack.c.l.b16 %v197
        %v276 = vunpack.c.l.b16 %v198
        %v277 = vunpack.c.l.b16 %v199
        %v278 = vunpack.c.l.b16 %v200
        %v279 = vunpack.c.l.b16 %v201
        %v280 = vunpack.c.l.b16 %v202
        %v281 = vunpack.c.l.b16 %v203
        %v282 = vunpack.c.l.b16 %v204
        %v283 = vpack.c.b16 %v252, %v251
        %v284 = vpack.c.b16 %v254, %v253
        %v285 = vpack.c.b16 %v256, %v255
        %v286 = vpack.c.b16 %v258, %v257
        %v287 = vpack.c.b16 %v260, %v259
        %v288 = vpack.c.b16 %v262, %v261
        %v289 = vpack.c.b16 %v264, %v263
        %v290 = vpack.c.b16 %v266, %v265
        %v291 = vpack.c.b16 %v268, %v267
        %v292 = vpack.c.b16 %v270, %v269
        %v293 = vpack.c.b16 %v272, %v271
        %v294 = vpack.c.b16 %v274, %v273
        %v295 = vpack.c.b16 %v276, %v275
        %v296 = vpack.c.b16 %v278, %v277
        %v297 = vpack.c.b16 %v280, %v279
        %v298 = vpack.c.b16 %v282, %v281
        %v301 = vunpack.c.l.b16 %v205
        %v302 = vunpack.c.h.b16 %v205
        %v303 = vunpack.c.l.b16 %v206
        %v304 = vunpack.c.h.b16 %v206
        %v305 = vpack.c.b16 %v303, %v301
        %v306 = vpack.c.b16 %v304, %v302
        %vm307 = vcmask 72704
        %v309 = vsel %vm307, %v283, 0
        %v312 = vsel %vm307, %v284, 0
        %v315 = vsel %vm307, %v285, 0
        %v318 = vsel %vm307, %v286, 0
        %v321 = vsel %vm307, %v287, 0
        %v324 = vsel %vm307, %v288, 0
        %v327 = vsel %vm307, %v289, 0
        %v330 = vsel %vm307, %v290, 0
        %v333 = vsel %vm307, %v291, 0
        %v336 = vsel %vm307, %v292, 0
        %v339 = vsel %vm307, %v293, 0
        %v342 = vsel %vm307, %v294, 0
        %v345 = vsel %vm307, %v295, 0
        %v348 = vsel %vm307, %v296, 0
        %v351 = vsel %vm307, %v297, 0
        %v354 = vsel %vm307, %v298, 0
        %vm356 = vcmask 1043456
        %vm357 = vcmask 1044480
        %v358 = vsel %vm356, 4294967295, 65535
        %v359 = vsel %vm357, %v358, 0
        %v361 = vand.u32 %v305, %v359
        %v364 = vand.u32 %v306, %v359
        %366 = vmatprep.subr.bf16.mxu0 %v364
        %367 = vmatpush1.bf16.msra.mxu0 %v361
        %368 = vmatprep.subr.bf16.mxu0 0
        %369 = vmatpush1.bf16.msra.mxu0 0
        %370 = vmatprep.subr.bf16.mxu0 0
        %371 = vmatpush1.bf16.msra.mxu0 0
        %372 = vmatprep.subr.bf16.mxu0 0
        %373 = vmatpush1.bf16.msra.mxu0 0
        %374 = vmatprep.subr.bf16.mxu0 0
        %375 = vmatpush1.bf16.msra.mxu0 0
        %376 = vmatprep.subr.bf16.mxu0 0
        %377 = vmatpush1.bf16.msra.mxu0 0
        %378 = vmatprep.subr.bf16.mxu0 0
        %379 = vmatpush1.bf16.msra.mxu0 0
        %380 = vmatprep.subr.bf16.mxu0 0
        %381 = vmatpush1.bf16.msra.mxu0 0
        %382 = vmatprep.subr.bf16.mxu0 0
        %383 = vmatpush1.bf16.msra.mxu0 0
        %384 = vmatprep.subr.bf16.mxu0 0
        %385 = vmatpush1.bf16.msra.mxu0 0
        %386 = vmatprep.subr.bf16.mxu0 0
        %387 = vmatpush1.bf16.msra.mxu0 0
        %388 = vmatprep.subr.bf16.mxu0 0
        %389 = vmatpush1.bf16.msra.mxu0 0
        %390 = vmatprep.subr.bf16.mxu0 0
        %391 = vmatpush1.bf16.msra.mxu0 0
        %392 = vmatprep.subr.bf16.mxu0 0
        %393 = vmatpush1.bf16.msra.mxu0 0
        %394 = vmatprep.subr.bf16.mxu0 0
        %395 = vmatpush1.bf16.msra.mxu0 0
        %396 = vmatprep.subr.bf16.mxu0 0
        %397 = vmatpush1.bf16.msra.mxu0 0
        %398 = vmatprep.mubr.bf16.mxu0 0
        %399 = vmatmul.mubr.bf16.gmra.mrb[0].mxu0 %v309
        %v400 = vpop.f32.mrb[0].mxu0
        %v401 = vadd.f32 %v212, %v400
        %v402 = vpop.f32.mrb[0].mxu0
        %v403 = vadd.f32 %v216, %v402
        %v404 = vpop.f32.mrb[0].mxu0
        %v405 = vadd.f32 %v212, %v404
        %v406 = vpop.f32.mrb[0].mxu0
        %v407 = vadd.f32 %v216, %v406
        %408 = vmatprep.mubr.bf16.mxu0 0
        %409 = vmatmul.mubr.bf16.gmra.mrb[0].mxu0 %v312
        %v410 = vpop.f32.mrb[0].mxu0
        %v411 = vadd.f32 %v212, %v410
        %v412 = vpop.f32.mrb[0].mxu0
        %v413 = vadd.f32 %v216, %v412
        %v414 = vpop.f32.mrb[0].mxu0
        %v415 = vadd.f32 %v212, %v414
        %v416 = vpop.f32.mrb[0].mxu0
        %v417 = vadd.f32 %v216, %v416
        %418 = vmatprep.mubr.bf16.mxu0 0
        %419 = vmatmul.mubr.bf16.gmra.mrb[0].mxu0 %v315
        %v420 = vpop.f32.mrb[0].mxu0
        %v421 = vadd.f32 %v212, %v420
        %v422 = vpop.f32.mrb[0].mxu0
        %v423 = vadd.f32 %v216, %v422
        %v424 = vpop.f32.mrb[0].mxu0
        %v425 = vadd.f32 %v212, %v424
        %v426 = vpop.f32.mrb[0].mxu0
        %v427 = vadd.f32 %v216, %v426
        %428 = vmatprep.mubr.bf16.mxu0 0
        %429 = vmatmul.mubr.bf16.gmra.mrb[0].mxu0 %v318
        %v430 = vpop.f32.mrb[0].mxu0
        %v431 = vadd.f32 %v212, %v430
        %v432 = vpop.f32.mrb[0].mxu0
        %v433 = vadd.f32 %v216, %v432
        %v434 = vpop.f32.mrb[0].mxu0
        %v435 = vadd.f32 %v212, %v434
        %v436 = vpop.f32.mrb[0].mxu0
        %v437 = vadd.f32 %v216, %v436
        %438 = vmatprep.mubr.bf16.mxu0 0
        %439 = vmatmul.mubr.bf16.gmra.mrb[0].mxu0 %v321
        %v440 = vpop.f32.mrb[0].mxu0
        %v441 = vadd.f32 %v212, %v440
        %v442 = vpop.f32.mrb[0].mxu0
        %v443 = vadd.f32 %v216, %v442
        %v444 = vpop.f32.mrb[0].mxu0
        %v445 = vadd.f32 %v212, %v444
        %v446 = vpop.f32.mrb[0].mxu0
        %v447 = vadd.f32 %v216, %v446
        %448 = vmatprep.mubr.bf16.mxu0 0
        %449 = vmatmul.mubr.bf16.gmra.mrb[0].mxu0 %v324
        %v450 = vpop.f32.mrb[0].mxu0
        %v451 = vadd.f32 %v212, %v450
        %v452 = vpop.f32.mrb[0].mxu0
        %v453 = vadd.f32 %v216, %v452
        %v454 = vpop.f32.mrb[0].mxu0
        %v455 = vadd.f32 %v212, %v454
        %v456 = vpop.f32.mrb[0].mxu0
        %v457 = vadd.f32 %v216, %v456
        %458 = vmatprep.mubr.bf16.mxu0 0
        %459 = vmatmul.mubr.bf16.gmra.mrb[0].mxu0 %v327
        %v460 = vpop.f32.mrb[0].mxu0
        %v461 = vadd.f32 %v212, %v460
        %v462 = vpop.f32.mrb[0].mxu0
        %v463 = vadd.f32 %v216, %v462
        %v464 = vpop.f32.mrb[0].mxu0
        %v465 = vadd.f32 %v212, %v464
        %v466 = vpop.f32.mrb[0].mxu0
        %v467 = vadd.f32 %v216, %v466
        %468 = vmatprep.mubr.bf16.mxu0 0
        %469 = vmatmul.mubr.bf16.gmra.mrb[0].mxu0 %v330
        %v470 = vpop.f32.mrb[0].mxu0
        %v471 = vadd.f32 %v212, %v470
        %v472 = vpop.f32.mrb[0].mxu0
        %v473 = vadd.f32 %v216, %v472
        %v474 = vpop.f32.mrb[0].mxu0
        %v475 = vadd.f32 %v212, %v474
        %v476 = vpop.f32.mrb[0].mxu0
        %v477 = vadd.f32 %v216, %v476
        %478 = vmatprep.mubr.bf16.mxu0 0
        %479 = vmatmul.mubr.bf16.gmra.mrb[0].mxu0 %v333
        %v480 = vpop.f32.mrb[0].mxu0
        %v481 = vadd.f32 %v212, %v480
        %v482 = vpop.f32.mrb[0].mxu0
        %v483 = vadd.f32 %v216, %v482
        %v484 = vpop.f32.mrb[0].mxu0
        %v485 = vadd.f32 %v212, %v484
        %v486 = vpop.f32.mrb[0].mxu0
        %v487 = vadd.f32 %v216, %v486
        %488 = vmatprep.mubr.bf16.mxu0 0
        %489 = vmatmul.mubr.bf16.gmra.mrb[0].mxu0 %v336
        %v490 = vpop.f32.mrb[0].mxu0
        %v491 = vadd.f32 %v212, %v490
        %v492 = vpop.f32.mrb[0].mxu0
        %v493 = vadd.f32 %v216, %v492
        %v494 = vpop.f32.mrb[0].mxu0
        %v495 = vadd.f32 %v212, %v494
        %v496 = vpop.f32.mrb[0].mxu0
        %v497 = vadd.f32 %v216, %v496
        %498 = vmatprep.mubr.bf16.mxu0 0
        %499 = vmatmul.mubr.bf16.gmra.mrb[0].mxu0 %v339
        %v500 = vpop.f32.mrb[0].mxu0
        %v501 = vadd.f32 %v212, %v500
        %v502 = vpop.f32.mrb[0].mxu0
        %v503 = vadd.f32 %v216, %v502
        %v504 = vpop.f32.mrb[0].mxu0
        %v505 = vadd.f32 %v212, %v504
        %v506 = vpop.f32.mrb[0].mxu0
        %v507 = vadd.f32 %v216, %v506
        %508 = vmatprep.mubr.bf16.mxu0 0
        %509 = vmatmul.mubr.bf16.gmra.mrb[0].mxu0 %v342
        %v510 = vpop.f32.mrb[0].mxu0
        %v511 = vadd.f32 %v212, %v510
        %v512 = vpop.f32.mrb[0].mxu0
        %v513 = vadd.f32 %v216, %v512
        %v514 = vpop.f32.mrb[0].mxu0
        %v515 = vadd.f32 %v212, %v514
        %v516 = vpop.f32.mrb[0].mxu0
        %v517 = vadd.f32 %v216, %v516
        %518 = vmatprep.mubr.bf16.mxu0 0
        %519 = vmatmul.mubr.bf16.gmra.mrb[0].mxu0 %v345
        %v520 = vpop.f32.mrb[0].mxu0
        %v521 = vadd.f32 %v212, %v520
        %v522 = vpop.f32.mrb[0].mxu0
        %v523 = vadd.f32 %v216, %v522
        %v524 = vpop.f32.mrb[0].mxu0
        %v525 = vadd.f32 %v212, %v524
        %v526 = vpop.f32.mrb[0].mxu0
        %v527 = vadd.f32 %v216, %v526
        %528 = vmatprep.mubr.bf16.mxu0 0
        %529 = vmatmul.mubr.bf16.gmra.mrb[0].mxu0 %v348
        %v530 = vpop.f32.mrb[0].mxu0
        %v531 = vadd.f32 %v212, %v530
        %v532 = vpop.f32.mrb[0].mxu0
        %v533 = vadd.f32 %v216, %v532
        %v534 = vpop.f32.mrb[0].mxu0
        %v535 = vadd.f32 %v212, %v534
        %v536 = vpop.f32.mrb[0].mxu0
        %v537 = vadd.f32 %v216, %v536
        %538 = vmatprep.mubr.bf16.mxu0 0
        %539 = vmatmul.mubr.bf16.gmra.mrb[0].mxu0 %v351
        %v540 = vpop.f32.mrb[0].mxu0
        %v541 = vadd.f32 %v212, %v540
        %v542 = vpop.f32.mrb[0].mxu0
        %v543 = vadd.f32 %v216, %v542
        %v544 = vpop.f32.mrb[0].mxu0
        %v545 = vadd.f32 %v212, %v544
        %v546 = vpop.f32.mrb[0].mxu0
        %v547 = vadd.f32 %v216, %v546
        %548 = vmatprep.mubr.bf16.mxu0 0
        %549 = vmatmul.mubr.bf16.gmra.mrb[0].mxu0 %v354
        %v550 = vpop.f32.mrb[0].mxu0
        %v551 = vadd.f32 %v212, %v550
        %v552 = vpop.f32.mrb[0].mxu0
        %v553 = vadd.f32 %v216, %v552
        %v554 = vpop.f32.mrb[0].mxu0
        %v555 = vadd.f32 %v212, %v554
        %v556 = vpop.f32.mrb[0].mxu0
        %v557 = vadd.f32 %v216, %v556
        %558 = vdwg.mxu0
        %v559 = vmax.f32 %v401, 0.0
        %v560 = vmax.f32 %v403, 0.0
        %v561 = vmax.f32 %v405, 0.0
        %v562 = vmax.f32 %v407, 0.0
        %v563 = vmax.f32 %v411, 0.0
        %v564 = vmax.f32 %v413, 0.0
        %v565 = vmax.f32 %v415, 0.0
        %v566 = vmax.f32 %v417, 0.0
        %v567 = vmax.f32 %v421, 0.0
        %v568 = vmax.f32 %v423, 0.0
        %v569 = vmax.f32 %v425, 0.0
        %v570 = vmax.f32 %v427, 0.0
        %v571 = vmax.f32 %v431, 0.0
        %v572 = vmax.f32 %v433, 0.0
        %v573 = vmax.f32 %v435, 0.0
        %v574 = vmax.f32 %v437, 0.0
        %v575 = vmax.f32 %v441, 0.0
        %v576 = vmax.f32 %v443, 0.0
        %v577 = vmax.f32 %v445, 0.0
        %v578 = vmax.f32 %v447, 0.0
        %v579 = vmax.f32 %v451, 0.0
        %v580 = vmax.f32 %v453, 0.0
        %v581 = vmax.f32 %v455, 0.0
        %v582 = vmax.f32 %v457, 0.0
        %v583 = vmax.f32 %v461, 0.0
        %v584 = vmax.f32 %v463, 0.0
        %v585 = vmax.f32 %v465, 0.0
        %v586 = vmax.f32 %v467, 0.0
        %v587 = vmax.f32 %v471, 0.0
        %v588 = vmax.f32 %v473, 0.0
        %v589 = vmax.f32 %v475, 0.0
        %v590 = vmax.f32 %v477, 0.0
        %v591 = vmax.f32 %v481, 0.0
        %v592 = vmax.f32 %v483, 0.0
        %v593 = vmax.f32 %v485, 0.0
        %v594 = vmax.f32 %v487, 0.0
        %v595 = vmax.f32 %v491, 0.0
        %v596 = vmax.f32 %v493, 0.0
        %v597 = vmax.f32 %v495, 0.0
        %v598 = vmax.f32 %v497, 0.0
        %v599 = vmax.f32 %v501, 0.0
        %v600 = vmax.f32 %v503, 0.0
        %v601 = vmax.f32 %v505, 0.0
        %v602 = vmax.f32 %v507, 0.0
        %v603 = vmax.f32 %v511, 0.0
        %v604 = vmax.f32 %v513, 0.0
        %v605 = vmax.f32 %v515, 0.0
        %v606 = vmax.f32 %v517, 0.0
        %v607 = vmax.f32 %v521, 0.0
        %v608 = vmax.f32 %v523, 0.0
        %v609 = vmax.f32 %v525, 0.0
        %v610 = vmax.f32 %v527, 0.0
        %v611 = vmax.f32 %v531, 0.0
        %v612 = vmax.f32 %v533, 0.0
        %v613 = vmax.f32 %v535, 0.0
        %v614 = vmax.f32 %v537, 0.0
        %v615 = vmax.f32 %v541, 0.0
        %v616 = vmax.f32 %v543, 0.0
        %v617 = vmax.f32 %v545, 0.0
        %v618 = vmax.f32 %v547, 0.0
        %v619 = vmax.f32 %v551, 0.0
        %v620 = vmax.f32 %v553, 0.0
        %v621 = vmax.f32 %v555, 0.0
        %v622 = vmax.f32 %v557, 0.0
        %623 = vst [vmem:[%s164] sm:$0xff] %v559
        %624 = vst [vmem:[%s164 + $0x8] sm:$0xff] %v560
        %625 = vst [vmem:[%s164 + $0x10] sm:$0xff] %v561
        %626 = vst [vmem:[%s164 + $0x18] sm:$0xff] %v562
        %627 = vst [vmem:[%s164 + $0x20] sm:$0xff] %v563
        %628 = vst [vmem:[%s164 + $0x28] sm:$0xff] %v564
        %629 = vst [vmem:[%s164 + $0x30] sm:$0xff] %v565
        %630 = vst [vmem:[%s164 + $0x38] sm:$0xff] %v566
        %631 = vst [vmem:[%s164 + $0x40] sm:$0xff] %v567
        %632 = vst [vmem:[%s164 + $0x48] sm:$0xff] %v568
        %633 = vst [vmem:[%s164 + $0x50] sm:$0xff] %v569
        %634 = vst [vmem:[%s164 + $0x58] sm:$0xff] %v570
        %635 = vst [vmem:[%s164 + $0x60] sm:$0xff] %v571
        %636 = vst [vmem:[%s164 + $0x68] sm:$0xff] %v572
        %637 = vst [vmem:[%s164 + $0x70] sm:$0xff] %v573
        %638 = vst [vmem:[%s164 + $0x78] sm:$0xff] %v574
        %639 = vst [vmem:[%s164 + $0x80] sm:$0xff] %v575
        %640 = vst [vmem:[%s164 + $0x88] sm:$0xff] %v576
        %641 = vst [vmem:[%s164 + $0x90] sm:$0xff] %v577
        %642 = vst [vmem:[%s164 + $0x98] sm:$0xff] %v578
        %643 = vst [vmem:[%s164 + $0xa0] sm:$0xff] %v579
        %644 = vst [vmem:[%s164 + $0xa8] sm:$0xff] %v580
        %645 = vst [vmem:[%s164 + $0xb0] sm:$0xff] %v581
        %646 = vst [vmem:[%s164 + $0xb8] sm:$0xff] %v582
        %647 = vst [vmem:[%s164 + $0xc0] sm:$0xff] %v583
        %648 = vst [vmem:[%s164 + $0xc8] sm:$0xff] %v584
        %649 = vst [vmem:[%s164 + $0xd0] sm:$0xff] %v585
        %650 = vst [vmem:[%s164 + $0xd8] sm:$0xff] %v586
        %651 = vst [vmem:[%s164 + $0xe0] sm:$0xff] %v587
        %652 = vst [vmem:[%s164 + $0xe8] sm:$0xff] %v588
        %653 = vst [vmem:[%s164 + $0xf0] sm:$0xff] %v589
        %654 = vst [vmem:[%s164 + $0xf8] sm:$0xff] %v590
        %655 = vst [vmem:[%s164 + $0x100] sm:$0xff] %v591
        %656 = vst [vmem:[%s164 + $0x108] sm:$0xff] %v592
        %657 = vst [vmem:[%s164 + $0x110] sm:$0xff] %v593
        %658 = vst [vmem:[%s164 + $0x118] sm:$0xff] %v594
        %659 = vst [vmem:[%s164 + $0x120] sm:$0xff] %v595
        %660 = vst [vmem:[%s164 + $0x128] sm:$0xff] %v596
        %661 = vst [vmem:[%s164 + $0x130] sm:$0xff] %v597
        %662 = vst [vmem:[%s164 + $0x138] sm:$0xff] %v598
        %663 = vst [vmem:[%s164 + $0x140] sm:$0xff] %v599
        %664 = vst [vmem:[%s164 + $0x148] sm:$0xff] %v600
        %665 = vst [vmem:[%s164 + $0x150] sm:$0xff] %v601
        %666 = vst [vmem:[%s164 + $0x158] sm:$0xff] %v602
        %667 = vst [vmem:[%s164 + $0x160] sm:$0xff] %v603
        %668 = vst [vmem:[%s164 + $0x168] sm:$0xff] %v604
        %669 = vst [vmem:[%s164 + $0x170] sm:$0xff] %v605
        %670 = vst [vmem:[%s164 + $0x178] sm:$0xff] %v606
        %671 = vst [vmem:[%s164 + $0x180] sm:$0xff] %v607
        %672 = vst [vmem:[%s164 + $0x188] sm:$0xff] %v608
        %673 = vst [vmem:[%s164 + $0x190] sm:$0xff] %v609
        %674 = vst [vmem:[%s164 + $0x198] sm:$0xff] %v610
        %675 = vst [vmem:[%s164 + $0x1a0] sm:$0xff] %v611
        %676 = vst [vmem:[%s164 + $0x1a8] sm:$0xff] %v612
        %677 = vst [vmem:[%s164 + $0x1b0] sm:$0xff] %v613
        %678 = vst [vmem:[%s164 + $0x1b8] sm:$0xff] %v614
        %679 = vst [vmem:[%s164 + $0x1c0] sm:$0xff] %v615
        %680 = vst [vmem:[%s164 + $0x1c8] sm:$0xff] %v616
        %681 = vst [vmem:[%s164 + $0x1d0] sm:$0xff] %v617
        %682 = vst [vmem:[%s164 + $0x1d8] sm:$0xff] %v618
        %683 = vst [vmem:[%s164 + $0x1e0] sm:$0xff] %v619
        %684 = vst [vmem:[%s164 + $0x1e8] sm:$0xff] %v620
        %685 = vst [vmem:[%s164 + $0x1f0] sm:$0xff] %v621
        %686 = vst [vmem:[%s164 + $0x1f8] sm:$0xff] %v622
        %s687 = sand.u32 %s93, 1
        %s688 = scalar_lea.sflag [#allocation3], %s687
        %s689 = sand.u32 %s93, 1
        %s690 = smul.addr %s689, 512
        %s691 = scalar_lea.vmem [#allocation2], %s690
        // Predicated region
        $region33: #{tpu_custom_call.1} parent=31 // pred_check
          %p692 = pneg %p103
        $region34: #{tpu_custom_call.1} parent=31 // pred_check_branch
          %694 = sbr.rel (%p692) target = $region36
        $region35: #{tpu_custom_call.1} parent=31 // pred_region
          %s695 = smul.u32 32, %s17
          %s697 = ssub.s32 8192, 8192
          %698 = vsyncadd %s688, %s697
          %s699 = smul.addr %s695, 2
          %s700 = smul.addr %s699, 128
          %s701 = scalar_lea.hbm %s3, %s700
          %s702 = sshll.u32 %s691, 4
          %s703 = int_to_ptr.vmem [resolvable:$true] %s702
          %708 = dma.vmem_to_hbm [thread:$0]  %s703, 8192, %s701, %s688, 256, 256, 16
        $region36: #{tpu_custom_call.1} parent=31 // pred_fallthru
          _
      $region32: #{tpu_custom_call.1} parent=5 // pred_fallthru
        _
      %p709 = scmp.le.s32.totalorder 2, %s12
      // Predicated region
      $region37: #{tpu_custom_call.1} parent=5 // pred_check
        %p710 = pneg %p709
      $region38: #{tpu_custom_call.1} parent=5 // pred_check_branch
        %712 = sbr.rel (%p710) target = $region40
      $region39: #{tpu_custom_call.1} parent=5 // pred_region
        %s713 = ssub.s32 %s12, 2
        // Predicated region
        $region41: #{tpu_custom_call.1} parent=39 // pred_check
          %p714 = pneg %p109
        $region42: #{tpu_custom_call.1} parent=39 // pred_check_branch
          %716 = sbr.rel (%p714) target = $region44
        $region43: #{tpu_custom_call.1} parent=39 // pred_region
          %s717 = sand.u32 %s94, 1
          %s718 = scalar_lea.sflag [#allocation3], %s717
          %s719 = sand.u32 %s94, 1
          %s720 = smul.addr %s719, 512
          %s721 = scalar_lea.vmem [#allocation2], %s720
          %722 = dma.done %s718, 8192
        $region44: #{tpu_custom_call.1} parent=39 // pred_fallthru
          _
      $region40: #{tpu_custom_call.1} parent=5 // pred_fallthru
        _
    $region6: #{tpu_custom_call.1} parent=1 // loop_footer
      %s16 = sadd.s32 1, %s12
    $region7: #{tpu_custom_call.1} parent=1 // loop_footer_branch
      %11 = sbr.rel target = $region3
    $region8: #{tpu_custom_call.1} parent=1 // loop_exit
      _
    %723 = vsyncpa [#allocation3], 1
    %s724 = scalar_lea.sflag [#allocation3], 1
    %725 = vsyncpa %s724, 1

</llo_original>
